<compile_context>
chip_gen: v7x
topology: tpu7x:2x2x1
jax: 0.10.0
libtpu: 0.0.40
codegen_flags: <defaults>
</compile_context>

<pallas_src>
import functools
import math

import jax
import jax.numpy as jnp
from jax.experimental import pallas as pl
from jax.experimental.pallas import tpu as pltpu


def _round_up(x, m):
    return ((x + m - 1) // m) * m


def _num_tensorcores():
    """2 on v7x (2 TC/chip), 1 on v5e/v6e."""
    try:
        kind = jax.devices()[0].device_kind.lower()
    except Exception:
        return 1
    return 2 if ("v7" in kind or "7x" in kind) else 1


def _vmem_capacity_bytes():
    try:
        return int(pltpu.get_tpu_info().vmem_capacity_bytes)
    except Exception:
        return 128 * 1024 * 1024


def mifcnet_kernel(x_ref,           # (block_b, D_in) f32  natural layout
                   w1_ref, b1_ref,  # (L, D_in) bf16, (L, 1) f32
                   w2_ref, b2_ref,  # (L, L)   bf16, (L, 1) f32
                   w3_ref, b3_ref,  # (L, L)   bf16, (L, 1) f32
                   wo_ref,          # (L, 1) f32  (output layer, VPU path)
                   bo_ref,          # (1,)  f32 scalar in SMEM
                   out_ref):        # (1, block_b) f32  lane-dense output
    # Cast to bf16 in-kernel (VPU), then contract over D_in with the batch
    # staying on the lane axis: h^T = W1 @ x^T done as a transpose_rhs
    # dot_general, so no explicit transpose of the x tile is needed.
    x = x_ref[...].astype(jnp.bfloat16)                          # (block_b, D_in)
    h = jax.lax.dot_general(w1_ref[...], x,
                            (((1,), (1,)), ((), ())),
                            preferred_element_type=jnp.float32)  # (L, block_b)
    h = jnp.maximum(h + b1_ref[...], 0.0)

    h = jnp.dot(w2_ref[...], h.astype(jnp.bfloat16),
                preferred_element_type=jnp.float32)
    h = jnp.maximum(h + b2_ref[...], 0.0)

    h = jnp.dot(w3_ref[...], h.astype(jnp.bfloat16),
                preferred_element_type=jnp.float32)
    h = jnp.maximum(h + b3_ref[...], 0.0)

    # fc_output (latent -> 1): VPU multiply + sublane reduction instead of an
    # N=1 MXU matmul; result is already lane-dense (1, block_b).
    logits = jnp.sum(h * wo_ref[...], axis=0, keepdims=True) + bo_ref[0]
    out_ref[...] = jax.nn.sigmoid(logits).astype(out_ref.dtype)


def _choose_block_b(B, num_tc, cap=2048):
    # Single grid step whenever it fits: on 1-TC chips (v5e/v6e) the grid is a
    # serial loop and every extra step is pure per-step overhead.
    if B <= cap and (num_tc == 1 or B <= 256):
        return B
    # Multi-step: lane-dense output tiling requires block_b % 128 == 0.
    block_b = min(cap, _round_up(pl.cdiv(B, num_tc), 128))
    nsteps = pl.cdiv(B, block_b)
    if num_tc == 2 and nsteps > 1 and nsteps % 2 == 1:
        # Even step count so both v7x TensorCores get equal work.
        block_b = _round_up(pl.cdiv(B, nsteps + 1), 128)
    return block_b


@functools.partial(jax.jit, static_argnames=("block_b",))
def mifcnet_forward(x, params, *, block_b=None):
    """Fused MIFCNet forward. x: (B, input_dim) float32. Returns (B, 1) f32."""
    B, D_in = x.shape
    L = params["w1"].shape[0]
    assert params["w1"].shape == (L, D_in)

    num_tc = _num_tensorcores()
    if block_b is None:
        block_b = _choose_block_b(B, num_tc)
    assert block_b == B or block_b % 128 == 0, (
        "block_b must equal the batch size or be a multiple of 128")
    grid = (pl.cdiv(B, block_b),)

    # ---- VMEM budget: real working set + headroom, no inflated floor -------
    bf16, f32 = 2, 4
    weight_bytes = (L * D_in + 2 * L * L) * bf16 + 4 * L * f32
    single_buffer_weights = weight_bytes >= (4 << 20)   # only matters at big L
    wbuf = 1 if single_buffer_weights else 2
    x_bytes = 2 * block_b * D_in * f32            # double-buffered x tile
    out_bytes = 2 * block_b * f32                 # double-buffered out tile
    act_bytes = (2 * L + D_in) * block_b * f32    # live intermediates (est.)
    working_set = wbuf * weight_bytes + x_bytes + out_bytes + act_bytes
    vmem_cap = min(_vmem_capacity_bytes() - (16 << 20), 96 << 20)
    vmem_limit = int(max(8 << 20, min(vmem_cap, 2 * working_set + (4 << 20))))

    def x_map(i):
        return (i, 0)

    def w_map(i):
        return (0, 0)

    def weight_spec(shape):
        # Grid-invariant input: single-buffer it when it is big enough for
        # double-buffering to waste meaningful VMEM (e.g. large L on v7x).
        if single_buffer_weights:
            try:
                return pl.BlockSpec(shape, w_map, pipeline_mode=pl.Buffered(1))
            except Exception:
                pass
        return pl.BlockSpec(shape, w_map)

    in_specs = [
        pl.BlockSpec((block_b, D_in), x_map),               # x, natural f32
        weight_spec((L, D_in)),                             # w1
        weight_spec((L, 1)),                                # b1
        weight_spec((L, L)),                                # w2
        weight_spec((L, 1)),                                # b2
        weight_spec((L, L)),                                # w3
        weight_spec((L, 1)),                                # b3
        weight_spec((L, 1)),                                # w_out
        pl.BlockSpec(memory_space=pltpu.MemorySpace.SMEM),  # b_out scalar
    ]
    out_specs = pl.BlockSpec((1, block_b), lambda i: (0, i))

    cost = pl.CostEstimate(
        flops=2 * B * (D_in * L + 2 * L * L + L),
        transcendentals=B,                                   # sigmoid
        bytes_accessed=B * D_in * f32 + weight_bytes + B * f32)

    outT = pl.pallas_call(
        mifcnet_kernel,
        out_shape=jax.ShapeDtypeStruct((1, B), jnp.float32),
        grid=grid,
        in_specs=in_specs,
        out_specs=out_specs,
        compiler_params=pltpu.CompilerParams(
            dimension_semantics=("parallel",),
            vmem_limit_bytes=vmem_limit),
        cost_estimate=cost,
    )(x,
      params["w1"], params["b1"],
      params["w2"], params["b2"],
      params["w3"], params["b3"],
      params["w_out"], params["b_out"])

    return outT[0, :, None]          # back to the module's (B, 1) layout


def init_params(key, input_dim, latent_dim, *, weight_dtype=jnp.bfloat16):
    """nn.Linear-style init (uniform +/- 1/sqrt(fan_in)), PyTorch (out,in) layout."""
    keys = jax.random.split(key, 8)

    def linear(kw, kb, fan_in, fan_out):
        bound = 1.0 / math.sqrt(fan_in)
        w = jax.random.uniform(kw, (fan_out, fan_in), jnp.float32, -bound, bound)
        b = jax.random.uniform(kb, (fan_out,), jnp.float32, -bound, bound)
        return w, b

    w1, b1 = linear(keys[0], keys[1], input_dim, latent_dim)
    w2, b2 = linear(keys[2], keys[3], latent_dim, latent_dim)
    w3, b3 = linear(keys[4], keys[5], latent_dim, latent_dim)
    wo, bo = linear(keys[6], keys[7], latent_dim, 1)

    return {
        "w1": w1.astype(weight_dtype), "b1": b1[:, None],   # (L, D_in) / (L, 1)
        "w2": w2.astype(weight_dtype), "b2": b2[:, None],
        "w3": w3.astype(weight_dtype), "b3": b3[:, None],
        # output layer stays f32 (used on the VPU, negligible bytes)
        "w_out": wo.reshape(latent_dim, 1).astype(jnp.float32),  # (L, 1)
        "b_out": bo.astype(jnp.float32),                          # (1,)
    }


def reference_forward(x, p):
    """Pure-jnp reference with the kernel's precision policy (bf16 matmul
    inputs, f32 accumulation)."""
    def layer(hT, w, b):
        y = jnp.dot(w.astype(jnp.bfloat16), hT.astype(jnp.bfloat16),
                    preferred_element_type=jnp.float32) + b
        return jnp.maximum(y, 0.0)

    hT = x.T
    hT = layer(hT, p["w1"], p["b1"])
    hT = layer(hT, p["w2"], p["b2"])
    hT = layer(hT, p["w3"], p["b3"])
    logits = jnp.sum(hT * p["w_out"], axis=0, keepdims=True) + p["b_out"][0]
    return jax.nn.sigmoid(logits).T                      # (B, 1)


def reference_forward_f32(x, p):
    """Full-f32 reference matching the original PyTorch module semantics."""
    def layer(h, w, b):
        return jnp.maximum(h @ w.astype(jnp.float32).T + b.reshape(1, -1), 0.0)

    h = layer(x, p["w1"], p["b1"])
    h = layer(h, p["w2"], p["b2"])
    h = layer(h, p["w3"], p["b3"])
    logits = h @ p["w_out"] + p["b_out"][0]
    return jax.nn.sigmoid(logits)


if __name__ == "__main__":
    key = jax.random.PRNGKey(0)
    k_param, k_x = jax.random.split(key)

    batch = 200          # not a multiple of 128: exercises the no-pad path
    input_dim = 48
    latent_dim = 32

    params = init_params(k_param, input_dim, latent_dim)
    x = jax.random.normal(k_x, (batch, input_dim), jnp.float32)

    out = jax.block_until_ready(mifcnet_forward(x, params))
    assert out.shape == (batch, 1)

    ref = reference_forward(x, params)
    assert jnp.allclose(out, ref, atol=5e-4, rtol=5e-4), \
        "mismatch vs matched-precision reference"

    ref32 = reference_forward_f32(x, params)
    assert jnp.allclose(out, ref32, atol=3e-2, rtol=3e-2), \
        "mismatch vs f32 module reference"

    print("KERNEL_OK")
</pallas_src>

<mosaic_0001>
module attributes {stable_mosaic.version = 11 : i64} {
  func.func @mifcnet_kernel(%arg0: i32, %arg1: memref<200x48xf32, #tpu.memory_space<vmem>>, %arg2: memref<32x48xbf16, #tpu.memory_space<vmem>>, %arg3: memref<32x1xf32, #tpu.memory_space<vmem>>, %arg4: memref<32x32xbf16, #tpu.memory_space<vmem>>, %arg5: memref<32x1xf32, #tpu.memory_space<vmem>>, %arg6: memref<32x32xbf16, #tpu.memory_space<vmem>>, %arg7: memref<32x1xf32, #tpu.memory_space<vmem>>, %arg8: memref<32x1xf32, #tpu.memory_space<vmem>>, %arg9: memref<1xf32, #tpu.memory_space<smem>>, %arg10: memref<1x200xf32, #tpu.memory_space<vmem>>) attributes {dimension_semantics = [#tpu.dimension_semantics<parallel>], iteration_bounds = array<i64: 1>, scalar_prefetch = 0 : i64, scratch_operands = 0 : i64, tpu.core_type = #tpu.core_type<tc>, window_params = [{transform_indices = @transform_0, window_bounds = array<i64: 200, 48>}, {pipeline_mode = #tpu.pipeline_mode<synchronous>, transform_indices = @transform_1, window_bounds = array<i64: 32, 48>}, {pipeline_mode = #tpu.pipeline_mode<synchronous>, transform_indices = @transform_2, window_bounds = array<i64: 32, 1>}, {pipeline_mode = #tpu.pipeline_mode<synchronous>, transform_indices = @transform_3, window_bounds = array<i64: 32, 32>}, {pipeline_mode = #tpu.pipeline_mode<synchronous>, transform_indices = @transform_4, window_bounds = array<i64: 32, 1>}, {pipeline_mode = #tpu.pipeline_mode<synchronous>, transform_indices = @transform_5, window_bounds = array<i64: 32, 32>}, {pipeline_mode = #tpu.pipeline_mode<synchronous>, transform_indices = @transform_6, window_bounds = array<i64: 32, 1>}, {pipeline_mode = #tpu.pipeline_mode<synchronous>, transform_indices = @transform_7, window_bounds = array<i64: 32, 1>}, {transform_indices = @transform_8, window_bounds = array<i64: 1>}, {transform_indices = @transform_9, window_bounds = array<i64: 1, 200>}]} {
    %c0 = arith.constant 0 : index
    %c0_0 = arith.constant 0 : index
    %0 = vector.load %arg1[%c0, %c0_0] : memref<200x48xf32, #tpu.memory_space<vmem>>, vector<200x48xf32>
    %1 = arith.truncf %0 : vector<200x48xf32> to vector<200x48xbf16>
    %c0_1 = arith.constant 0 : index
    %c0_2 = arith.constant 0 : index
    %2 = vector.load %arg2[%c0_1, %c0_2] : memref<32x48xbf16, #tpu.memory_space<vmem>>, vector<32x48xbf16>
    %cst = arith.constant dense<0.000000e+00> : vector<32x200xf32>
    %3 = tpu.matmul %2, %1, %cst {dimension_numbers = #tpu.dot_dimension_numbers<[1], [1], [0], [0], [0, 0, 1, 0], [], []>} : vector<32x48xbf16>, vector<200x48xbf16>, vector<32x200xf32> -> vector<32x200xf32>
    %c0_3 = arith.constant 0 : index
    %c0_4 = arith.constant 0 : index
    %4 = vector.load %arg3[%c0_3, %c0_4] : memref<32x1xf32, #tpu.memory_space<vmem>>, vector<32x1xf32>
    %5 = vector.broadcast %4 : vector<32x1xf32> to vector<32x200xf32>
    %6 = arith.addf %3, %5 : vector<32x200xf32>
    %cst_5 = arith.constant 0.000000e+00 : f32
    %7 = vector.broadcast %cst_5 : f32 to vector<32x200xf32>
    %8 = arith.maximumf %6, %7 : vector<32x200xf32>
    %c0_6 = arith.constant 0 : index
    %c0_7 = arith.constant 0 : index
    %9 = vector.load %arg4[%c0_6, %c0_7] : memref<32x32xbf16, #tpu.memory_space<vmem>>, vector<32x32xbf16>
    %10 = arith.truncf %8 : vector<32x200xf32> to vector<32x200xbf16>
    %cst_8 = arith.constant dense<0.000000e+00> : vector<32x200xf32>
    %11 = tpu.matmul %9, %10, %cst_8 {dimension_numbers = #tpu.dot_dimension_numbers<[1], [0], [0], [1], [0, 0, 1, 1], [], []>} : vector<32x32xbf16>, vector<32x200xbf16>, vector<32x200xf32> -> vector<32x200xf32>
    %c0_9 = arith.constant 0 : index
    %c0_10 = arith.constant 0 : index
    %12 = vector.load %arg5[%c0_9, %c0_10] : memref<32x1xf32, #tpu.memory_space<vmem>>, vector<32x1xf32>
    %13 = vector.broadcast %12 : vector<32x1xf32> to vector<32x200xf32>
    %14 = arith.addf %11, %13 : vector<32x200xf32>
    %cst_11 = arith.constant 0.000000e+00 : f32
    %15 = vector.broadcast %cst_11 : f32 to vector<32x200xf32>
    %16 = arith.maximumf %14, %15 : vector<32x200xf32>
    %c0_12 = arith.constant 0 : index
    %c0_13 = arith.constant 0 : index
    %17 = vector.load %arg6[%c0_12, %c0_13] : memref<32x32xbf16, #tpu.memory_space<vmem>>, vector<32x32xbf16>
    %18 = arith.truncf %16 : vector<32x200xf32> to vector<32x200xbf16>
    %cst_14 = arith.constant dense<0.000000e+00> : vector<32x200xf32>
    %19 = tpu.matmul %17, %18, %cst_14 {dimension_numbers = #tpu.dot_dimension_numbers<[1], [0], [0], [1], [0, 0, 1, 1], [], []>} : vector<32x32xbf16>, vector<32x200xbf16>, vector<32x200xf32> -> vector<32x200xf32>
    %c0_15 = arith.constant 0 : index
    %c0_16 = arith.constant 0 : index
    %20 = vector.load %arg7[%c0_15, %c0_16] : memref<32x1xf32, #tpu.memory_space<vmem>>, vector<32x1xf32>
    %21 = vector.broadcast %20 : vector<32x1xf32> to vector<32x200xf32>
    %22 = arith.addf %19, %21 : vector<32x200xf32>
    %cst_17 = arith.constant 0.000000e+00 : f32
    %23 = vector.broadcast %cst_17 : f32 to vector<32x200xf32>
    %24 = arith.maximumf %22, %23 : vector<32x200xf32>
    %c0_18 = arith.constant 0 : index
    %c0_19 = arith.constant 0 : index
    %25 = vector.load %arg8[%c0_18, %c0_19] : memref<32x1xf32, #tpu.memory_space<vmem>>, vector<32x1xf32>
    %26 = vector.broadcast %25 : vector<32x1xf32> to vector<32x200xf32>
    %27 = arith.mulf %24, %26 : vector<32x200xf32>
    %cst_20 = arith.constant dense<0.000000e+00> : vector<200xf32>
    %28 = vector.multi_reduction <add>, %27, %cst_20 [0] : vector<32x200xf32> to vector<200xf32>
    %29 = vector.shape_cast %28 : vector<200xf32> to vector<1x200xf32>
    %c0_21 = arith.constant 0 : index
    %30 = memref.load %arg9[%c0_21] : memref<1xf32, #tpu.memory_space<smem>>
    %31 = vector.broadcast %30 : f32 to vector<1x200xf32>
    %32 = arith.addf %29, %31 : vector<1x200xf32>
    %33 = arith.negf %32 : vector<1x200xf32>
    %34 = math.exp %33 : vector<1x200xf32>
    %cst_22 = arith.constant 1.000000e+00 : f32
    %35 = vector.broadcast %cst_22 : f32 to vector<1x200xf32>
    %36 = arith.addf %35, %34 : vector<1x200xf32>
    %37 = arith.divf %35, %36 : vector<1x200xf32>
    %c0_23 = arith.constant 0 : index
    %c0_24 = arith.constant 0 : index
    %38 = vector.load %arg10[%c0_23, %c0_24] : memref<1x200xf32, #tpu.memory_space<vmem>>, vector<1x200xf32>
    tpu.vector_store %arg10[%c0_23, %c0_24], %37 {strides = array<i32>} : memref<1x200xf32, #tpu.memory_space<vmem>>, vector<1x200xf32>,
    return
  }
  func.func @transform_0(%arg0: i32) -> (i32, i32) {
    %c0_i32 = arith.constant 0 : i32
    %c0_i32_0 = arith.constant 0 : i32
    return %arg0, %c0_i32 : i32, i32
  }
  func.func @transform_1(%arg0: i32) -> (i32, i32) {
    %c0_i32 = arith.constant 0 : i32
    %c0_i32_0 = arith.constant 0 : i32
    %c0_i32_1 = arith.constant 0 : i32
    return %c0_i32, %c0_i32_0 : i32, i32
  }
  func.func @transform_2(%arg0: i32) -> (i32, i32) {
    %c0_i32 = arith.constant 0 : i32
    %c0_i32_0 = arith.constant 0 : i32
    %c0_i32_1 = arith.constant 0 : i32
    return %c0_i32, %c0_i32_0 : i32, i32
  }
  func.func @transform_3(%arg0: i32) -> (i32, i32) {
    %c0_i32 = arith.constant 0 : i32
    %c0_i32_0 = arith.constant 0 : i32
    %c0_i32_1 = arith.constant 0 : i32
    return %c0_i32, %c0_i32_0 : i32, i32
  }
  func.func @transform_4(%arg0: i32) -> (i32, i32) {
    %c0_i32 = arith.constant 0 : i32
    %c0_i32_0 = arith.constant 0 : i32
    %c0_i32_1 = arith.constant 0 : i32
    return %c0_i32, %c0_i32_0 : i32, i32
  }
  func.func @transform_5(%arg0: i32) -> (i32, i32) {
    %c0_i32 = arith.constant 0 : i32
    %c0_i32_0 = arith.constant 0 : i32
    %c0_i32_1 = arith.constant 0 : i32
    return %c0_i32, %c0_i32_0 : i32, i32
  }
  func.func @transform_6(%arg0: i32) -> (i32, i32) {
    %c0_i32 = arith.constant 0 : i32
    %c0_i32_0 = arith.constant 0 : i32
    %c0_i32_1 = arith.constant 0 : i32
    return %c0_i32, %c0_i32_0 : i32, i32
  }
  func.func @transform_7(%arg0: i32) -> (i32, i32) {
    %c0_i32 = arith.constant 0 : i32
    %c0_i32_0 = arith.constant 0 : i32
    %c0_i32_1 = arith.constant 0 : i32
    return %c0_i32, %c0_i32_0 : i32, i32
  }
  func.func @transform_8(%arg0: i32) -> i32 {
    %c0_i32 = arith.constant 0 : i32
    %c0_i32_0 = arith.constant 0 : i32
    return %c0_i32 : i32
  }
  func.func @transform_9(%arg0: i32) -> (i32, i32) {
    %c0_i32 = arith.constant 0 : i32
    %c0_i32_0 = arith.constant 0 : i32
    return %c0_i32, %arg0 : i32, i32
  }
}

</mosaic_0001>

<llo_original>
// kernel: mifcnet_forward.1
$region0: #{mifcnet_forward.1}
  #allocation0 [shape = 'u32[]', space=smem, size = 0x4, offset = 0x4, fixed_abs, tag = 'smem constant byte address 0x4 - core index']
  #allocation1 [shape = 'u32[144,128]{1,0:T(1,128)}', space=vmem, size = 0x12000, scoped, tag = 'internal scratch']
  #allocation2 [shape = 'f32[1]{0:T(128)S(6)}', space=smem, size = 0x200, scoped, tag = 'scoped memory for mifcnet_forward.1']
  %s0 = inlined_call_operand.vmem [shape: f32[200,48], index: 0, kind: input, shape index: {}]
  %s1 = inlined_call_operand.vmem [shape: bf16[32,48], index: 1, kind: input, shape index: {}]
  %s2 = inlined_call_operand.vmem [shape: f32[32,1], index: 2, kind: input, shape index: {}]
  %s3 = inlined_call_operand.vmem [shape: bf16[32,32], index: 3, kind: input, shape index: {}]
  %s4 = inlined_call_operand.vmem [shape: f32[32,1], index: 4, kind: input, shape index: {}]
  %s5 = inlined_call_operand.vmem [shape: bf16[32,32], index: 5, kind: input, shape index: {}]
  %s6 = inlined_call_operand.vmem [shape: f32[32,1], index: 6, kind: input, shape index: {}]
  %s7 = inlined_call_operand.vmem [shape: f32[32,1], index: 7, kind: input, shape index: {}]
  %s8 = inlined_call_operand.<no memory space> [shape: f32[1], index: 8, kind: input, shape index: {}]
  %s9 = inlined_call_operand.hbm [shape: f32[1,200], index: 9, kind: output, shape index: {}]
  %s10 = sld [smem:[#allocation0]]
  $region46: #{mifcnet_forward.1} parent=0
    _
  %s12 = ssub.s32 1, %s10
  %s13 = scalar_select 0, %s12, %s10
  %14 = sst [smem:[#allocation2]] %s8
  $region1: #{mifcnet_forward.1} parent=0
    #allocation3 [shape = 'u8[1024]{0}', space=vmem, size = 0x400, scoped, tag = 'output window, operand 0, single buffered']
    #allocation4 [shape = 's32[1]{0}', space=sflag, size = 0x4, scoped, tag = 'scoped memory for mifcnet_forward.1']
    %15 = vsyncpa [#allocation4], 0
    // Predicated region
    $region2: #{mifcnet_forward.1} parent=1 // pred_check
      _
    $region3: #{mifcnet_forward.1} parent=1 // pred_check_branch
      %17 = sbr.rel (0) target = $region5
    $region4: #{mifcnet_forward.1} parent=1 // pred_region
      _
    $region5: #{mifcnet_forward.1} parent=1 // pred_fallthru
      _
    // Predicated region
    $region6: #{mifcnet_forward.1} parent=1 // pred_check
      _
    $region7: #{mifcnet_forward.1} parent=1 // pred_check_branch
      %19 = sbr.rel (0) target = $region9
    $region8: #{mifcnet_forward.1} parent=1 // pred_region
      _
    $region9: #{mifcnet_forward.1} parent=1 // pred_fallthru
      _
    // Predicated region
    $region10: #{mifcnet_forward.1} parent=1 // pred_check
      _
    $region11: #{mifcnet_forward.1} parent=1 // pred_check_branch
      %21 = sbr.rel (0) target = $region13
    $region12: #{mifcnet_forward.1} parent=1 // pred_region
      _
    $region13: #{mifcnet_forward.1} parent=1 // pred_fallthru
      _
    // Predicated region
    $region14: #{mifcnet_forward.1} parent=1 // pred_check
      _
    $region15: #{mifcnet_forward.1} parent=1 // pred_check_branch
      %23 = sbr.rel (0) target = $region17
    $region16: #{mifcnet_forward.1} parent=1 // pred_region
      _
    $region17: #{mifcnet_forward.1} parent=1 // pred_fallthru
      _
    // Predicated region
    $region18: #{mifcnet_forward.1} parent=1 // pred_check
      _
    $region19: #{mifcnet_forward.1} parent=1 // pred_check_branch
      %25 = sbr.rel (0) target = $region21
    $region20: #{mifcnet_forward.1} parent=1 // pred_region
      _
    $region21: #{mifcnet_forward.1} parent=1 // pred_fallthru
      _
    // Predicated region
    $region22: #{mifcnet_forward.1} parent=1 // pred_check
      _
    $region23: #{mifcnet_forward.1} parent=1 // pred_check_branch
      %27 = sbr.rel (0) target = $region25
    $region24: #{mifcnet_forward.1} parent=1 // pred_region
      _
    $region25: #{mifcnet_forward.1} parent=1 // pred_fallthru
      _
    // Predicated region
    $region26: #{mifcnet_forward.1} parent=1 // pred_check
      _
    $region27: #{mifcnet_forward.1} parent=1 // pred_check_branch
      %29 = sbr.rel (0) target = $region29
    $region28: #{mifcnet_forward.1} parent=1 // pred_region
      _
    $region29: #{mifcnet_forward.1} parent=1 // pred_fallthru
      _
    // Predicated region
    $region30: #{mifcnet_forward.1} parent=1 // pred_check
      _
    $region31: #{mifcnet_forward.1} parent=1 // pred_check_branch
      %31 = sbr.rel (0) target = $region33
    $region32: #{mifcnet_forward.1} parent=1 // pred_region
      _
    $region33: #{mifcnet_forward.1} parent=1 // pred_fallthru
      _
    // Predicated region
    $region34: #{mifcnet_forward.1} parent=1 // pred_check
      _
    $region35: #{mifcnet_forward.1} parent=1 // pred_check_branch
      %33 = sbr.rel (0) target = $region37
    $region36: #{mifcnet_forward.1} parent=1 // pred_region
      _
    $region37: #{mifcnet_forward.1} parent=1 // pred_fallthru
      _
    %v35 = vld [vmem:[%s0] sm:$0xff]
    %v36 = vld [vmem:[%s0 + $0x8] sm:$0xff]
    %v37 = vld [vmem:[%s0 + $0x10] sm:$0xff]
    %v38 = vld [vmem:[%s0 + $0x18] sm:$0xff]
    %v39 = vld [vmem:[%s0 + $0x20] sm:$0xff]
    %v40 = vld [vmem:[%s0 + $0x28] sm:$0xff]
    %v41 = vld [vmem:[%s0 + $0x30] sm:$0xff]
    %v42 = vld [vmem:[%s0 + $0x38] sm:$0xff]
    %v43 = vld [vmem:[%s0 + $0x40] sm:$0xff]
    %v44 = vld [vmem:[%s0 + $0x48] sm:$0xff]
    %v45 = vld [vmem:[%s0 + $0x50] sm:$0xff]
    %v46 = vld [vmem:[%s0 + $0x58] sm:$0xff]
    %v47 = vld [vmem:[%s0 + $0x60] sm:$0xff]
    %v48 = vld [vmem:[%s0 + $0x68] sm:$0xff]
    %v49 = vld [vmem:[%s0 + $0x70] sm:$0xff]
    %v50 = vld [vmem:[%s0 + $0x78] sm:$0xff]
    %v51 = vld [vmem:[%s0 + $0x80] sm:$0xff]
    %v52 = vld [vmem:[%s0 + $0x88] sm:$0xff]
    %v53 = vld [vmem:[%s0 + $0x90] sm:$0xff]
    %v54 = vld [vmem:[%s0 + $0x98] sm:$0xff]
    %v55 = vld [vmem:[%s0 + $0xa0] sm:$0xff]
    %v56 = vld [vmem:[%s0 + $0xa8] sm:$0xff]
    %v57 = vld [vmem:[%s0 + $0xb0] sm:$0xff]
    %v58 = vld [vmem:[%s0 + $0xb8] sm:$0xff]
    %v59 = vld [vmem:[%s0 + $0xc0] sm:$0xff]
    %v60 = vpack.c.bf16 %v36, %v35
    %v61 = vpack.c.bf16 %v38, %v37
    %v62 = vpack.c.bf16 %v40, %v39
    %v63 = vpack.c.bf16 %v42, %v41
    %v64 = vpack.c.bf16 %v44, %v43
    %v65 = vpack.c.bf16 %v46, %v45
    %v66 = vpack.c.bf16 %v48, %v47
    %v67 = vpack.c.bf16 %v50, %v49
    %v68 = vpack.c.bf16 %v52, %v51
    %v69 = vpack.c.bf16 %v54, %v53
    %v70 = vpack.c.bf16 %v56, %v55
    %v71 = vpack.c.bf16 %v58, %v57
    %v72 = vpack.c.bf16 %v59, %v59
    %v73 = vld [vmem:[%s1] sm:$0xf]
    %v74 = vld [vmem:[%s1 + $0x4] sm:$0xf]
    %v75 = vld [vmem:[%s1 + $0x8] sm:$0xf]
    %v76 = vld [vmem:[%s1 + $0xc] sm:$0xf]
    %v77 = vld [vmem:[%s2] sm:$0xff]
    %v78 = vld [vmem:[%s2 + $0x8] sm:$0xff]
    %v79 = vld [vmem:[%s2 + $0x10] sm:$0xff]
    %v80 = vld [vmem:[%s2 + $0x18] sm:$0xff]
    %82 = vset.pattern.permute.xlu0 0
    %83 = vperm.xlu0 %82, %v77
    %v84 = vpop.permute.xlu0 %83
    %87 = vset.pattern.permute.xlu0 0
    %88 = vperm.xlu0 %87, %v78
    %v89 = vpop.permute.xlu0 %88
    %92 = vset.pattern.permute.xlu0 0
    %93 = vperm.xlu0 %92, %v79
    %v94 = vpop.permute.xlu0 %93
    %97 = vset.pattern.permute.xlu0 0
    %98 = vperm.xlu0 %97, %v80
    %v99 = vpop.permute.xlu0 %98
    %v105 = vunpack.c.l.b16 %v73
    %v106 = vunpack.c.l.b16 %v74
    %v107 = vunpack.c.l.b16 %v75
    %v108 = vunpack.c.l.b16 %v76
    %v109 = vpack.c.b16 %v106, %v105
    %v110 = vpack.c.b16 %v108, %v107
    %vm111 = vcmask 392192
    %v113 = vsel %vm111, %v109, 0
    %v116 = vsel %vm111, %v110, 0
    %v119 = vsel %vm111, %v60, 0
    %v122 = vsel %vm111, %v61, 0
    %v125 = vsel %vm111, %v62, 0
    %v128 = vsel %vm111, %v63, 0
    %v131 = vsel %vm111, %v64, 0
    %v134 = vsel %vm111, %v65, 0
    %v137 = vsel %vm111, %v66, 0
    %v140 = vsel %vm111, %v67, 0
    %v143 = vsel %vm111, %v68, 0
    %v146 = vsel %vm111, %v69, 0
    %v149 = vsel %vm111, %v70, 0
    %v152 = vsel %vm111, %v71, 0
    %v155 = vsel %vm111, %v72, 0
    %157 = vmatprep.subr.bf16.mxu0 0
    %158 = vmatpush1.bf16.xpose.msra.mxu0 %v119
    %159 = vmatprep.subr.bf16.mxu0 0
    %160 = vmatpush1.bf16.xpose.msra.mxu0 %v122
    %161 = vmatprep.subr.bf16.mxu0 0
    %162 = vmatpush1.bf16.xpose.msra.mxu0 %v125
    %163 = vmatprep.subr.bf16.mxu0 0
    %164 = vmatpush1.bf16.xpose.msra.mxu0 %v128
    %165 = vmatprep.subr.bf16.mxu0 0
    %166 = vmatpush1.bf16.xpose.msra.mxu0 %v131
    %167 = vmatprep.subr.bf16.mxu0 0
    %168 = vmatpush1.bf16.xpose.msra.mxu0 %v134
    %169 = vmatprep.subr.bf16.mxu0 0
    %170 = vmatpush1.bf16.xpose.msra.mxu0 %v137
    %171 = vmatprep.subr.bf16.mxu0 0
    %172 = vmatpush1.bf16.xpose.msra.mxu0 %v140
    %173 = vmatprep.subr.bf16.mxu0 0
    %174 = vmatpush1.bf16.xpose.msra.mxu0 %v143
    %175 = vmatprep.subr.bf16.mxu0 0
    %176 = vmatpush1.bf16.xpose.msra.mxu0 %v146
    %177 = vmatprep.subr.bf16.mxu0 0
    %178 = vmatpush1.bf16.xpose.msra.mxu0 %v149
    %179 = vmatprep.subr.bf16.mxu0 0
    %180 = vmatpush1.bf16.xpose.msra.mxu0 %v152
    %181 = vmatprep.subr.bf16.mxu0 0
    %182 = vmatpush1.bf16.xpose.msra.mxu0 %v155
    %183 = vmatprep.subr.bf16.mxu0 0
    %184 = vmatpush1.bf16.xpose.msra.mxu0 0
    %185 = vmatprep.subr.bf16.mxu0 0
    %186 = vmatpush1.bf16.xpose.msra.mxu0 0
    %187 = vmatprep.subr.bf16.mxu0 0
    %188 = vmatpush1.bf16.xpose.msra.mxu0 0
    %189 = vmatprep.mubr.bf16.mxu0 0
    %190 = vmatmul.mubr.bf16.gmra.mrb[0].mxu0 %v113
    %v191 = vpop.f32.mrb[0].mxu0
    %v192 = vadd.f32 %v84, %v191
    %v193 = vpop.f32.mrb[0].mxu0
    %v194 = vadd.f32 %v84, %v193
    %v195 = vpop.f32.mrb[0].mxu0
    %v196 = vadd.f32 %v89, %v195
    %v197 = vpop.f32.mrb[0].mxu0
    %v198 = vadd.f32 %v89, %v197
    %199 = vmatprep.mubr.bf16.mxu0 0
    %200 = vmatmul.mubr.bf16.gmra.mrb[0].mxu0 %v116
    %v201 = vpop.f32.mrb[0].mxu0
    %v202 = vadd.f32 %v94, %v201
    %v203 = vpop.f32.mrb[0].mxu0
    %v204 = vadd.f32 %v94, %v203
    %v205 = vpop.f32.mrb[0].mxu0
    %v206 = vadd.f32 %v99, %v205
    %v207 = vpop.f32.mrb[0].mxu0
    %v208 = vadd.f32 %v99, %v207
    %209 = vdwg.mxu0
    %v210 = vmax.f32 %v192, 0.0
    %v211 = vmax.f32 %v194, 0.0
    %v212 = vmax.f32 %v196, 0.0
    %v213 = vmax.f32 %v198, 0.0
    %v214 = vmax.f32 %v202, 0.0
    %v215 = vmax.f32 %v204, 0.0
    %v216 = vmax.f32 %v206, 0.0
    %v217 = vmax.f32 %v208, 0.0
    %v218 = vld [vmem:[%s3] sm:$0xf]
    %v219 = vld [vmem:[%s3 + $0x4] sm:$0xf]
    %v220 = vld [vmem:[%s3 + $0x8] sm:$0xf]
    %v221 = vld [vmem:[%s3 + $0xc] sm:$0xf]
    %v222 = vpack.c.bf16 %v212, %v210
    %v223 = vpack.c.bf16 %v213, %v211
    %v224 = vpack.c.bf16 %v216, %v214
    %v225 = vpack.c.bf16 %v217, %v215
    %v226 = vld [vmem:[%s4] sm:$0xff]
    %v227 = vld [vmem:[%s4 + $0x8] sm:$0xff]
    %v228 = vld [vmem:[%s4 + $0x10] sm:$0xff]
    %v229 = vld [vmem:[%s4 + $0x18] sm:$0xff]
    %231 = vset.pattern.permute.xlu0 0
    %232 = vperm.xlu0 %231, %v226
    %v233 = vpop.permute.xlu0 %232
    %236 = vset.pattern.permute.xlu0 0
    %237 = vperm.xlu0 %236, %v227
    %v238 = vpop.permute.xlu0 %237
    %241 = vset.pattern.permute.xlu0 0
    %242 = vperm.xlu0 %241, %v228
    %v243 = vpop.permute.xlu0 %242
    %246 = vset.pattern.permute.xlu0 0
    %247 = vperm.xlu0 %246, %v229
    %v248 = vpop.permute.xlu0 %247
    %v254 = vunpack.c.l.b16 %v218
    %v255 = vunpack.c.l.b16 %v219
    %v256 = vunpack.c.l.b16 %v220
    %v257 = vunpack.c.l.b16 %v221
    %v258 = vpack.c.b16 %v255, %v254
    %v259 = vpack.c.b16 %v257, %v256
    %vm260 = vcmask 261120
    %v262 = vsel %vm260, %v258, 0
    %v265 = vsel %vm260, %v259, 0
    %267 = vmatprep.subr.bf16.mxu0 %v223
    %268 = vmatpush1.bf16.msra.mxu0 %v222
    %269 = vmatprep.subr.bf16.mxu0 %v225
    %270 = vmatpush1.bf16.msra.mxu0 %v224
    %271 = vmatprep.subr.bf16.mxu0 0
    %272 = vmatpush1.bf16.msra.mxu0 0
    %273 = vmatprep.subr.bf16.mxu0 0
    %274 = vmatpush1.bf16.msra.mxu0 0
    %275 = vmatprep.subr.bf16.mxu0 0
    %276 = vmatpush1.bf16.msra.mxu0 0
    %277 = vmatprep.subr.bf16.mxu0 0
    %278 = vmatpush1.bf16.msra.mxu0 0
    %279 = vmatprep.subr.bf16.mxu0 0
    %280 = vmatpush1.bf16.msra.mxu0 0
    %281 = vmatprep.subr.bf16.mxu0 0
    %282 = vmatpush1.bf16.msra.mxu0 0
    %283 = vmatprep.subr.bf16.mxu0 0
    %284 = vmatpush1.bf16.msra.mxu0 0
    %285 = vmatprep.subr.bf16.mxu0 0
    %286 = vmatpush1.bf16.msra.mxu0 0
    %287 = vmatprep.subr.bf16.mxu0 0
    %288 = vmatpush1.bf16.msra.mxu0 0
    %289 = vmatprep.subr.bf16.mxu0 0
    %290 = vmatpush1.bf16.msra.mxu0 0
    %291 = vmatprep.subr.bf16.mxu0 0
    %292 = vmatpush1.bf16.msra.mxu0 0
    %293 = vmatprep.subr.bf16.mxu0 0
    %294 = vmatpush1.bf16.msra.mxu0 0
    %295 = vmatprep.subr.bf16.mxu0 0
    %296 = vmatpush1.bf16.msra.mxu0 0
    %297 = vmatprep.subr.bf16.mxu0 0
    %298 = vmatpush1.bf16.msra.mxu0 0
    %299 = vmatprep.mubr.bf16.mxu0 0
    %300 = vmatmul.mubr.bf16.gmra.mrb[0].mxu0 %v262
    %v301 = vpop.f32.mrb[0].mxu0
    %v302 = vadd.f32 %v233, %v301
    %v303 = vpop.f32.mrb[0].mxu0
    %v304 = vadd.f32 %v233, %v303
    %v305 = vpop.f32.mrb[0].mxu0
    %v306 = vadd.f32 %v238, %v305
    %v307 = vpop.f32.mrb[0].mxu0
    %v308 = vadd.f32 %v238, %v307
    %309 = vmatprep.mubr.bf16.mxu0 0
    %310 = vmatmul.mubr.bf16.gmra.mrb[0].mxu0 %v265
    %v311 = vpop.f32.mrb[0].mxu0
    %v312 = vadd.f32 %v243, %v311
    %v313 = vpop.f32.mrb[0].mxu0
    %v314 = vadd.f32 %v243, %v313
    %v315 = vpop.f32.mrb[0].mxu0
    %v316 = vadd.f32 %v248, %v315
    %v317 = vpop.f32.mrb[0].mxu0
    %v318 = vadd.f32 %v248, %v317
    %319 = vdwg.mxu0
    %v320 = vmax.f32 %v302, 0.0
    %v321 = vmax.f32 %v304, 0.0
    %v322 = vmax.f32 %v306, 0.0
    %v323 = vmax.f32 %v308, 0.0
    %v324 = vmax.f32 %v312, 0.0
    %v325 = vmax.f32 %v314, 0.0
    %v326 = vmax.f32 %v316, 0.0
    %v327 = vmax.f32 %v318, 0.0
    %v328 = vld [vmem:[%s5] sm:$0xf]
    %v329 = vld [vmem:[%s5 + $0x4] sm:$0xf]
    %v330 = vld [vmem:[%s5 + $0x8] sm:$0xf]
    %v331 = vld [vmem:[%s5 + $0xc] sm:$0xf]
    %v332 = vpack.c.bf16 %v322, %v320
    %v333 = vpack.c.bf16 %v323, %v321
    %v334 = vpack.c.bf16 %v326, %v324
    %v335 = vpack.c.bf16 %v327, %v325
    %v336 = vld [vmem:[%s6] sm:$0xff]
    %v337 = vld [vmem:[%s6 + $0x8] sm:$0xff]
    %v338 = vld [vmem:[%s6 + $0x10] sm:$0xff]
    %v339 = vld [vmem:[%s6 + $0x18] sm:$0xff]
    %341 = vset.pattern.permute.xlu0 0
    %342 = vperm.xlu0 %341, %v336
    %v343 = vpop.permute.xlu0 %342
    %346 = vset.pattern.permute.xlu0 0
    %347 = vperm.xlu0 %346, %v337
    %v348 = vpop.permute.xlu0 %347
    %351 = vset.pattern.permute.xlu0 0
    %352 = vperm.xlu0 %351, %v338
    %v353 = vpop.permute.xlu0 %352
    %356 = vset.pattern.permute.xlu0 0
    %357 = vperm.xlu0 %356, %v339
    %v358 = vpop.permute.xlu0 %357
    %v364 = vunpack.c.l.b16 %v328
    %v365 = vunpack.c.l.b16 %v329
    %v366 = vunpack.c.l.b16 %v330
    %v367 = vunpack.c.l.b16 %v331
    %v368 = vpack.c.b16 %v365, %v364
    %v369 = vpack.c.b16 %v367, %v366
    %v371 = vsel %vm260, %v368, 0
    %v374 = vsel %vm260, %v369, 0
    %376 = vmatprep.subr.bf16.mxu0 %v333
    %377 = vmatpush1.bf16.msra.mxu0 %v332
    %378 = vmatprep.subr.bf16.mxu0 %v335
    %379 = vmatpush1.bf16.msra.mxu0 %v334
    %380 = vmatprep.subr.bf16.mxu0 0
    %381 = vmatpush1.bf16.msra.mxu0 0
    %382 = vmatprep.subr.bf16.mxu0 0
    %383 = vmatpush1.bf16.msra.mxu0 0
    %384 = vmatprep.subr.bf16.mxu0 0
    %385 = vmatpush1.bf16.msra.mxu0 0
    %386 = vmatprep.subr.bf16.mxu0 0
    %387 = vmatpush1.bf16.msra.mxu0 0
    %388 = vmatprep.subr.bf16.mxu0 0
    %389 = vmatpush1.bf16.msra.mxu0 0
    %390 = vmatprep.subr.bf16.mxu0 0
    %391 = vmatpush1.bf16.msra.mxu0 0
    %392 = vmatprep.subr.bf16.mxu0 0
    %393 = vmatpush1.bf16.msra.mxu0 0
    %394 = vmatprep.subr.bf16.mxu0 0
    %395 = vmatpush1.bf16.msra.mxu0 0
    %396 = vmatprep.subr.bf16.mxu0 0
    %397 = vmatpush1.bf16.msra.mxu0 0
    %398 = vmatprep.subr.bf16.mxu0 0
    %399 = vmatpush1.bf16.msra.mxu0 0
    %400 = vmatprep.subr.bf16.mxu0 0
    %401 = vmatpush1.bf16.msra.mxu0 0
    %402 = vmatprep.subr.bf16.mxu0 0
    %403 = vmatpush1.bf16.msra.mxu0 0
    %404 = vmatprep.subr.bf16.mxu0 0
    %405 = vmatpush1.bf16.msra.mxu0 0
    %406 = vmatprep.subr.bf16.mxu0 0
    %407 = vmatpush1.bf16.msra.mxu0 0
    %408 = vmatprep.mubr.bf16.mxu0 0
    %409 = vmatmul.mubr.bf16.gmra.mrb[0].mxu0 %v371
    %v410 = vpop.f32.mrb[0].mxu0
    %v411 = vadd.f32 %v343, %v410
    %v412 = vpop.f32.mrb[0].mxu0
    %v413 = vadd.f32 %v343, %v412
    %v414 = vpop.f32.mrb[0].mxu0
    %v415 = vadd.f32 %v348, %v414
    %v416 = vpop.f32.mrb[0].mxu0
    %v417 = vadd.f32 %v348, %v416
    %418 = vmatprep.mubr.bf16.mxu0 0
    %419 = vmatmul.mubr.bf16.gmra.mrb[0].mxu0 %v374
    %v420 = vpop.f32.mrb[0].mxu0
    %v421 = vadd.f32 %v353, %v420
    %v422 = vpop.f32.mrb[0].mxu0
    %v423 = vadd.f32 %v353, %v422
    %v424 = vpop.f32.mrb[0].mxu0
    %v425 = vadd.f32 %v358, %v424
    %v426 = vpop.f32.mrb[0].mxu0
    %v427 = vadd.f32 %v358, %v426
    %428 = vdwg.mxu0
    %v429 = vmax.f32 %v411, 0.0
    %v430 = vmax.f32 %v413, 0.0
    %v431 = vmax.f32 %v415, 0.0
    %v432 = vmax.f32 %v417, 0.0
    %v433 = vmax.f32 %v421, 0.0
    %v434 = vmax.f32 %v423, 0.0
    %v435 = vmax.f32 %v425, 0.0
    %v436 = vmax.f32 %v427, 0.0
    %v437 = vld [vmem:[%s7] sm:$0xff]
    %v438 = vld [vmem:[%s7 + $0x8] sm:$0xff]
    %v439 = vld [vmem:[%s7 + $0x10] sm:$0xff]
    %v440 = vld [vmem:[%s7 + $0x18] sm:$0xff]
    %442 = vset.pattern.permute.xlu0 0
    %443 = vperm.xlu0 %442, %v437
    %v444 = vpop.permute.xlu0 %443
    %447 = vset.pattern.permute.xlu0 0
    %448 = vperm.xlu0 %447, %v438
    %v449 = vpop.permute.xlu0 %448
    %452 = vset.pattern.permute.xlu0 0
    %453 = vperm.xlu0 %452, %v439
    %v454 = vpop.permute.xlu0 %453
    %457 = vset.pattern.permute.xlu0 0
    %458 = vperm.xlu0 %457, %v440
    %v459 = vpop.permute.xlu0 %458
    %v461 = vmul.f32 %v429, %v444
    %v462 = vmul.f32 %v430, %v444
    %v463 = vmul.f32 %v431, %v449
    %v464 = vmul.f32 %v432, %v449
    %v465 = vmul.f32 %v433, %v454
    %v466 = vmul.f32 %v434, %v454
    %v467 = vmul.f32 %v435, %v459
    %v468 = vmul.f32 %v436, %v459
    %v469 = vadd.f32 %v461, %v463
    %v470 = vadd.f32 %v469, %v465
    %v471 = vadd.f32 %v470, %v467
    %v472 = vrot.slane %v471, 4
    %v473 = vadd.f32 %v471, %v472
    %v474 = vrot.slane %v473, 2
    %v475 = vadd.f32 %v473, %v474
    %v476 = vrot.slane %v475, 1
    %v477 = vadd.f32 %v475, %v476
    %vm478 = vcmask 588800
    %v479 = vsel %vm478, %v462, 0.0
    %v480 = vsel %vm478, %v464, 0.0
    %v481 = vadd.f32 %v479, %v480
    %v482 = vsel %vm478, %v466, 0.0
    %v483 = vadd.f32 %v481, %v482
    %v484 = vsel %vm478, %v468, 0.0
    %v485 = vadd.f32 %v483, %v484
    %v486 = vrot.slane %v485, 4
    %v487 = vadd.f32 %v485, %v486
    %v488 = vrot.slane %v487, 2
    %v489 = vadd.f32 %v487, %v488
    %v490 = vrot.slane %v489, 1
    %v491 = vadd.f32 %v489, %v490
    %s492 = sld [smem:[#allocation2]]
    %v493 = vstv %s492
    %v494 = vadd.f32 %v477, %v493
    %v495 = vadd.f32 %v491, %v493
    %v496 = vxor.u32 %v494, 2147483648
    %v497 = vxor.u32 %v495, 2147483648
    %v498 = vmul.f32 %v496, 1.442695
    %v499 = vpow.pop %v498
    %v500 = vmul.f32 %v497, 1.442695
    %v501 = vpow.pop %v500
    %v502 = vadd.f32 %v499, 1.0
    %v503 = vadd.f32 %v501, 1.0
    %v504 = vrcp.pop %v502
    %v505 = vmul.f32 1.0, %v504
    %v506 = vrcp.pop %v503
    %v507 = vmul.f32 1.0, %v506
    %v510 = vcombine.low %v505, %v507
    %v512 = vunpack.c.l.s4 1966171168
    %v513 = vunpack.c.0.s8 %v512
    %v514 = vlaneseq
    %v515 = vshrl.u32 %v514, 7
    %v516 = vsub.s32 %v513, %v515
    %v517 = vrot.slane %v510, %v516
    %v519 = vunpack.c.l.s4 1966171168
    %v520 = vunpack.c.0.s8 %v519
    %v521 = vlaneseq
    %v522 = vshrl.u32 %v521, 7
    %v523 = vsub.s32 %v520, %v522
    %v524 = vrot.slane %v517, %v523
    %v526 = vlaneseq
    %vm527 = vcmp.ge.s32.totalorder %v526, 0
    %vm528 = vcmp.lt.s32.totalorder %v526, 200
    %vm529 = vmand %vm527, %vm528
    %530 = vst.msk [vmem:[#allocation3] sm:$0x3] %vm529, %v524
    // Predicated region
    $region38: #{mifcnet_forward.1} parent=1 // pred_check
      _
    $region39: #{mifcnet_forward.1} parent=1 // pred_check_branch
      %532 = sbr.rel (0) target = $region41
    $region40: #{mifcnet_forward.1} parent=1 // pred_region
      %s534 = ssub.s32 32, 32
      %535 = vsyncadd [#allocation4], %s534
      %s537 = sshll.u32 [#allocation3], 4
      %s538 = int_to_ptr.vmem [resolvable:$true] %s537
      %540 = dma.vmem_to_hbm [thread:$0]  %s538, 32, %s9, [#allocation4]
    $region41: #{mifcnet_forward.1} parent=1 // pred_fallthru
      _
    // Predicated region
    $region42: #{mifcnet_forward.1} parent=1 // pred_check
      _
    $region43: #{mifcnet_forward.1} parent=1 // pred_check_branch
      %542 = sbr.rel (0) target = $region45
    $region44: #{mifcnet_forward.1} parent=1 // pred_region
      %543 = dma.done [#allocation4], 32
    $region45: #{mifcnet_forward.1} parent=1 // pred_fallthru
      _
    %544 = vsyncpa [#allocation4], 1

</llo_original>
